<compile_context>
chip_gen: v7x
topology: tpu7x:2x2x1
jax: 0.10.0
libtpu: 0.0.40
codegen_flags: <defaults>
</compile_context>

<pallas_src>
import functools
import math

import jax
import jax.numpy as jnp
from jax.experimental import pallas as pl
from jax.experimental.pallas import tpu as pltpu


def _attn_kernel(x_ref, w_ref, o_ref, m_sc, l_sc, acc_sc, *, seq_len, masked):
    """One (batch-block, seq-chunk) grid step of online-softmax attention."""
    si = pl.program_id(1)
    tb = x_ref.shape[0]
    ts = x_ref.shape[1]

    @pl.when(si == 0)
    def _():
        m_sc[...] = jnp.full(m_sc.shape, -jnp.inf, m_sc.dtype)
        l_sc[...] = jnp.zeros(l_sc.shape, l_sc.dtype)
        acc_sc[...] = jnp.zeros(acc_sc.shape, acc_sc.dtype)

    w = w_ref[...][None]                                # (1, 1, Hp)

    # scores = <x_row, w>: VPU multiply + lane reduce; lane-dense (tb, ts).
    s = jnp.sum(x_ref[...] * w, axis=-1)                # (tb, ts)
    if masked:                                          # S padded to a ts multiple
        pos = si * ts + jax.lax.broadcasted_iota(jnp.int32, (tb, ts), 1)
        s = jnp.where(pos < seq_len, s, -jnp.inf)

    # Online max-stabilized softmax accumulation over sequence chunks.
    m_prev = m_sc[...]                                   # (tb, 1)
    m_new = jnp.maximum(m_prev, jnp.max(s, axis=-1, keepdims=True))
    alpha = jnp.exp(m_prev - m_new)                      # (tb, 1)
    p = jnp.exp(s - m_new)                               # (tb, ts) lane-dense

    l_sc[...] = alpha * l_sc[...] + jnp.sum(p, axis=-1, keepdims=True)
    # fused weighted sum: broadcast p only inside the sublane reduce
    acc_sc[...] = alpha * acc_sc[...] + jnp.sum(p[..., None] * x_ref[...], axis=1)
    m_sc[...] = m_new

    @pl.when(si == pl.num_programs(1) - 1)
    def _():
        inv = pl.reciprocal(l_sc[...], approx=True)      # (tb, 1), EUP slot
        o_ref[...] = (acc_sc[...] * inv).astype(o_ref.dtype)


def _round_up(v, m):
    return -(-v // m) * m


def _choose_blocks(B, S, Hp, itemsize, budget=4 << 20):
    """Pick (tb, ts): batch rows and seq chunk per grid step (~4 MiB x block)."""
    row_bytes = max(1, S * Hp * itemsize)
    if B <= 8:
        tb = B                                   # tiny batch: one batch block
    else:
        tb = max(8, min(B, budget // row_bytes))
        # >= 4 batch blocks when the batch allows: 2 per TC on dual-TC (v7x).
        tb = min(tb, _round_up(pl.cdiv(B, 4), 8))
        tb = max(8, (tb // 8) * 8)               # sublane-dense
        nb = pl.cdiv(B, tb)
        if nb > 1 and nb % 2:                    # try for an even block count
            tb_even = max(8, _round_up(pl.cdiv(B, nb + 1), 8))
            if pl.cdiv(B, tb_even) % 2 == 0:
                tb = tb_even
    # Sequence chunk: whole sequence if it fits the block budget, else tile it
    # (the online softmax keeps this exact).
    if tb * row_bytes <= 2 * budget:
        ts = S
    else:
        ts = max(8, ((budget // max(1, tb * Hp * itemsize)) // 8) * 8)
        ts = min(ts, S)
    return tb, ts


def attn_forward(x, zu_weight):
    """Attn forward.

    Args:
      x:         (B, S, H) float32
      zu_weight: (1, H) float32  -- PyTorch nn.Linear(H, 1).weight layout

    Returns:
      (B, H) float32
    """
    B, S, H = x.shape
    scale = 1.0 / math.sqrt(H)
    Hp = _round_up(H, 128)                       # lane-dense vregs & stores

    # Fold the 1/sqrt(H) scale into the resident (1, Hp) weight row once.
    w_row = (zu_weight.reshape(1, H) * scale).astype(x.dtype)
    if Hp != H:
        w_row = jnp.pad(w_row, ((0, 0), (0, Hp - H)))

    itemsize = x.dtype.itemsize
    tb, ts = _choose_blocks(B, S, Hp, itemsize)
    nb = pl.cdiv(B, tb)
    ns = pl.cdiv(S, ts)
    b_pad, s_pad = nb * tb, ns * ts
    masked = s_pad != S                          # padded seq rows -> -inf score

    if (b_pad, s_pad, Hp) != (B, S, H):
        x = jnp.pad(x, ((0, b_pad - B), (0, s_pad - S), (0, Hp - H)))

    # Footprint: double-buffered x block + compute temporaries + out/scratch,
    # with headroom; clamped to v7x-safe 64 MiB.
    block_bytes = tb * ts * Hp * itemsize
    vmem_limit = int(min(
        64 << 20,
        max(32 << 20, 4 * block_bytes + 8 * tb * Hp * 4 + (4 << 20))))

    kernel = functools.partial(_attn_kernel, seq_len=S, masked=masked)

    out = pl.pallas_call(
        kernel,
        out_shape=jax.ShapeDtypeStruct((b_pad, Hp), x.dtype),
        grid_spec=pltpu.PrefetchScalarGridSpec(
            num_scalar_prefetch=0,
            grid=(nb, ns),
            in_specs=[
                pl.BlockSpec((tb, ts, Hp), lambda b, s: (b, s, 0)),
                # Constant index map keeps the tiny weight resident across the
                # whole grid -- do NOT turn this into a per-step re-fetch.
                pl.BlockSpec((1, Hp), lambda b, s: (0, 0)),
            ],
            out_specs=pl.BlockSpec((tb, Hp), lambda b, s: (b, 0)),
            scratch_shapes=[
                pltpu.VMEM((tb, 1), jnp.float32),    # running max
                pltpu.VMEM((tb, 1), jnp.float32),    # running denom
                pltpu.VMEM((tb, Hp), jnp.float32),   # running weighted sum
            ],
        ),
        compiler_params=pltpu.CompilerParams(
            dimension_semantics=("parallel", "arbitrary"),
            vmem_limit_bytes=vmem_limit,
        ),
    )(x, w_row)

    if (b_pad, Hp) != (B, H):
        out = out[:B, :H]
    return out


def attn_reference(x, zu_weight):
    """Pure-JAX reference matching the PyTorch module."""
    H = x.shape[-1]
    scale = 1.0 / math.sqrt(H)
    w = jnp.einsum("bsh,h->bs", x, zu_weight[0]) * scale       # (B, S)
    w = jax.nn.softmax(w, axis=-1)
    return jnp.einsum("bs,bsh->bh", w, x)                      # (B, H)


if __name__ == "__main__":
    key = jax.random.PRNGKey(0)
    B, S, H = 2, 8, 32

    kx, kw = jax.random.split(key)
    x = jax.random.normal(kx, (B, S, H), dtype=jnp.float32)
    # Deterministic init of nn.Linear(H, 1, bias=False).weight, shape (1, H).
    bound = 1.0 / math.sqrt(H)
    zu_weight = jax.random.uniform(
        kw, (1, H), minval=-bound, maxval=bound, dtype=jnp.float32
    )

    out = attn_forward(x, zu_weight)
    out = jax.block_until_ready(out)

    ref = attn_reference(x, zu_weight)
    assert out.shape == (B, H)
    # Tolerance covers the EUP approx-reciprocal used for the softmax denom.
    assert jnp.allclose(out, ref, atol=2e-3, rtol=2e-3)

    print("KERNEL_OK")
</pallas_src>

<mosaic_0001>
module attributes {stable_mosaic.version = 11 : i64} {
  func.func @_attn_kernel(%arg0: i32, %arg1: i32, %arg2: memref<2x8x128xf32, #tpu.memory_space<vmem>>, %arg3: memref<1x128xf32, #tpu.memory_space<vmem>>, %arg4: memref<2x128xf32, #tpu.memory_space<vmem>>, %arg5: memref<2x1xf32, #tpu.memory_space<vmem>>, %arg6: memref<2x1xf32, #tpu.memory_space<vmem>>, %arg7: memref<2x128xf32, #tpu.memory_space<vmem>>) attributes {dimension_semantics = [#tpu.dimension_semantics<parallel>, #tpu.dimension_semantics<arbitrary>], iteration_bounds = array<i64: 1, 1>, scalar_prefetch = 0 : i64, scratch_operands = 3 : i64, tpu.core_type = #tpu.core_type<tc>, window_params = [{transform_indices = @transform_0, window_bounds = array<i64: 2, 8, 128>}, {pipeline_mode = #tpu.pipeline_mode<synchronous>, transform_indices = @transform_1, window_bounds = array<i64: 1, 128>}, {transform_indices = @transform_2, window_bounds = array<i64: 2, 128>}]} {
    %c0_i32 = arith.constant 0 : i32
    %0 = arith.cmpi eq, %arg1, %c0_i32 : i32
    %1 = arith.extui %0 : i1 to i32
    %c0_i32_0 = arith.constant 0 : i32
    %2 = arith.cmpi ne, %1, %c0_i32_0 : i32
    scf.if %2 {
      %cst_25 = arith.constant 0xFF800000 : f32
      %38 = vector.broadcast %cst_25 : f32 to vector<2x1xf32>
      %c0_26 = arith.constant 0 : index
      %c0_27 = arith.constant 0 : index
      %39 = vector.load %arg5[%c0_26, %c0_27] : memref<2x1xf32, #tpu.memory_space<vmem>>, vector<2x1xf32>
      tpu.vector_store %arg5[%c0_26, %c0_27], %38 {strides = array<i32>} : memref<2x1xf32, #tpu.memory_space<vmem>>, vector<2x1xf32>,
      %cst_28 = arith.constant 0.000000e+00 : f32
      %40 = vector.broadcast %cst_28 : f32 to vector<2x1xf32>
      %c0_29 = arith.constant 0 : index
      %c0_30 = arith.constant 0 : index
      %41 = vector.load %arg6[%c0_29, %c0_30] : memref<2x1xf32, #tpu.memory_space<vmem>>, vector<2x1xf32>
      tpu.vector_store %arg6[%c0_29, %c0_30], %40 {strides = array<i32>} : memref<2x1xf32, #tpu.memory_space<vmem>>, vector<2x1xf32>,
      %cst_31 = arith.constant 0.000000e+00 : f32
      %42 = vector.broadcast %cst_31 : f32 to vector<2x128xf32>
      %c0_32 = arith.constant 0 : index
      %c0_33 = arith.constant 0 : index
      %43 = vector.load %arg7[%c0_32, %c0_33] : memref<2x128xf32, #tpu.memory_space<vmem>>, vector<2x128xf32>
      tpu.vector_store %arg7[%c0_32, %c0_33], %42 {strides = array<i32>} : memref<2x128xf32, #tpu.memory_space<vmem>>, vector<2x128xf32>,
    } else {
    }
    %c0 = arith.constant 0 : index
    %c0_1 = arith.constant 0 : index
    %3 = vector.load %arg3[%c0, %c0_1] : memref<1x128xf32, #tpu.memory_space<vmem>>, vector<1x128xf32>
    %4 = vector.shape_cast %3 : vector<1x128xf32> to vector<1x1x128xf32>
    %c0_2 = arith.constant 0 : index
    %c0_3 = arith.constant 0 : index
    %c0_4 = arith.constant 0 : index
    %5 = vector.load %arg2[%c0_2, %c0_3, %c0_4] : memref<2x8x128xf32, #tpu.memory_space<vmem>>, vector<2x8x128xf32>
    %6 = vector.broadcast %4 : vector<1x1x128xf32> to vector<2x8x128xf32>
    %7 = arith.mulf %5, %6 : vector<2x8x128xf32>
    %cst = arith.constant dense<0.000000e+00> : vector<2x8xf32>
    %8 = vector.multi_reduction <add>, %7, %cst [2] : vector<2x8x128xf32> to vector<2x8xf32>
    %c0_5 = arith.constant 0 : index
    %c0_6 = arith.constant 0 : index
    %9 = vector.load %arg5[%c0_5, %c0_6] : memref<2x1xf32, #tpu.memory_space<vmem>>, vector<2x1xf32>
    %cst_7 = arith.constant dense<0xFF800000> : vector<2xf32>
    %10 = vector.multi_reduction <maximumf>, %8, %cst_7 [1] : vector<2x8xf32> to vector<2xf32>
    %11 = vector.shape_cast %10 : vector<2xf32> to vector<2x1xf32>
    %12 = arith.maximumf %9, %11 : vector<2x1xf32>
    %13 = arith.subf %9, %12 : vector<2x1xf32>
    %14 = math.exp %13 : vector<2x1xf32>
    %15 = vector.broadcast %12 : vector<2x1xf32> to vector<2x8xf32>
    %16 = arith.subf %8, %15 : vector<2x8xf32>
    %17 = math.exp %16 : vector<2x8xf32>
    %c0_8 = arith.constant 0 : index
    %c0_9 = arith.constant 0 : index
    %18 = vector.load %arg6[%c0_8, %c0_9] : memref<2x1xf32, #tpu.memory_space<vmem>>, vector<2x1xf32>
    %19 = arith.mulf %14, %18 : vector<2x1xf32>
    %cst_10 = arith.constant dense<0.000000e+00> : vector<2xf32>
    %20 = vector.multi_reduction <add>, %17, %cst_10 [1] : vector<2x8xf32> to vector<2xf32>
    %21 = vector.shape_cast %20 : vector<2xf32> to vector<2x1xf32>
    %22 = arith.addf %19, %21 : vector<2x1xf32>
    %c0_11 = arith.constant 0 : index
    %c0_12 = arith.constant 0 : index
    %23 = vector.load %arg6[%c0_11, %c0_12] : memref<2x1xf32, #tpu.memory_space<vmem>>, vector<2x1xf32>
    tpu.vector_store %arg6[%c0_11, %c0_12], %22 {strides = array<i32>} : memref<2x1xf32, #tpu.memory_space<vmem>>, vector<2x1xf32>,
    %c0_13 = arith.constant 0 : index
    %c0_14 = arith.constant 0 : index
    %24 = vector.load %arg7[%c0_13, %c0_14] : memref<2x128xf32, #tpu.memory_space<vmem>>, vector<2x128xf32>
    %25 = vector.broadcast %14 : vector<2x1xf32> to vector<2x128xf32>
    %26 = arith.mulf %25, %24 : vector<2x128xf32>
    %27 = vector.shape_cast %17 : vector<2x8xf32> to vector<2x8x1xf32>
    %c0_15 = arith.constant 0 : index
    %c0_16 = arith.constant 0 : index
    %c0_17 = arith.constant 0 : index
    %28 = vector.load %arg2[%c0_15, %c0_16, %c0_17] : memref<2x8x128xf32, #tpu.memory_space<vmem>>, vector<2x8x128xf32>
    %29 = vector.broadcast %27 : vector<2x8x1xf32> to vector<2x8x128xf32>
    %30 = arith.mulf %29, %28 : vector<2x8x128xf32>
    %cst_18 = arith.constant dense<0.000000e+00> : vector<2x128xf32>
    %31 = vector.multi_reduction <add>, %30, %cst_18 [1] : vector<2x8x128xf32> to vector<2x128xf32>
    %32 = arith.addf %26, %31 : vector<2x128xf32>
    %c0_19 = arith.constant 0 : index
    %c0_20 = arith.constant 0 : index
    %33 = vector.load %arg7[%c0_19, %c0_20] : memref<2x128xf32, #tpu.memory_space<vmem>>, vector<2x128xf32>
    tpu.vector_store %arg7[%c0_19, %c0_20], %32 {strides = array<i32>} : memref<2x128xf32, #tpu.memory_space<vmem>>, vector<2x128xf32>,
    %c0_21 = arith.constant 0 : index
    %c0_22 = arith.constant 0 : index
    %34 = vector.load %arg5[%c0_21, %c0_22] : memref<2x1xf32, #tpu.memory_space<vmem>>, vector<2x1xf32>
    tpu.vector_store %arg5[%c0_21, %c0_22], %12 {strides = array<i32>} : memref<2x1xf32, #tpu.memory_space<vmem>>, vector<2x1xf32>,
    %c0_i32_23 = arith.constant 0 : i32
    %35 = arith.cmpi eq, %arg1, %c0_i32_23 : i32
    %36 = arith.extui %35 : i1 to i32
    %c0_i32_24 = arith.constant 0 : i32
    %37 = arith.cmpi ne, %36, %c0_i32_24 : i32
    scf.if %37 {
      %c0_25 = arith.constant 0 : index
      %c0_26 = arith.constant 0 : index
      %38 = vector.load %arg6[%c0_25, %c0_26] : memref<2x1xf32, #tpu.memory_space<vmem>>, vector<2x1xf32>
      %39 = tpu.reciprocal %38 {approx = true} : vector<2x1xf32> -> vector<2x1xf32>
      %c0_27 = arith.constant 0 : index
      %c0_28 = arith.constant 0 : index
      %40 = vector.load %arg7[%c0_27, %c0_28] : memref<2x128xf32, #tpu.memory_space<vmem>>, vector<2x128xf32>
      %41 = vector.broadcast %39 : vector<2x1xf32> to vector<2x128xf32>
      %42 = arith.mulf %40, %41 : vector<2x128xf32>
      %c0_29 = arith.constant 0 : index
      %c0_30 = arith.constant 0 : index
      %43 = vector.load %arg4[%c0_29, %c0_30] : memref<2x128xf32, #tpu.memory_space<vmem>>, vector<2x128xf32>
      tpu.vector_store %arg4[%c0_29, %c0_30], %42 {strides = array<i32>} : memref<2x128xf32, #tpu.memory_space<vmem>>, vector<2x128xf32>,
    } else {
    }
    return
  }
  func.func @transform_0(%arg0: i32, %arg1: i32) -> (i32, i32, i32) {
    %c0_i32 = arith.constant 0 : i32
    %c0_i32_0 = arith.constant 0 : i32
    return %arg0, %arg1, %c0_i32 : i32, i32, i32
  }
  func.func @transform_1(%arg0: i32, %arg1: i32) -> (i32, i32) {
    %c0_i32 = arith.constant 0 : i32
    %c0_i32_0 = arith.constant 0 : i32
    %c0_i32_1 = arith.constant 0 : i32
    return %c0_i32, %c0_i32_0 : i32, i32
  }
  func.func @transform_2(%arg0: i32, %arg1: i32) -> (i32, i32) {
    %c0_i32 = arith.constant 0 : i32
    %c0_i32_0 = arith.constant 0 : i32
    return %arg0, %c0_i32 : i32, i32
  }
}

</mosaic_0001>

<llo_original>
// kernel: tpu_custom_call.1
$region0: #{tpu_custom_call.1}
  #allocation0 [shape = 'u32[]', space=smem, size = 0x4, offset = 0x4, fixed_abs, tag = 'smem constant byte address 0x4 - core index']
  #allocation1 [shape = 'u32[144,128]{1,0:T(1,128)}', space=vmem, size = 0x12000, scoped, tag = 'internal scratch']
  #allocation2 [shape = 'f32[2,1]{1,0:T(2,128)}', space=vmem, size = 0x400, scoped, tag = 'scratch operand']
  #allocation3 [shape = 'f32[2,1]{1,0:T(2,128)}', space=vmem, size = 0x400, scoped, tag = 'scratch operand']
  #allocation4 [shape = 'f32[2,128]{1,0:T(2,128)}', space=vmem, size = 0x400, scoped, tag = 'scratch operand']
  %s0 = inlined_call_operand.hbm [shape: f32[2,8,128], index: 0, kind: input, shape index: {}]
  %s1 = inlined_call_operand.vmem [shape: f32[1,128], index: 1, kind: input, shape index: {}]
  %s2 = inlined_call_operand.hbm [shape: f32[2,128], index: 2, kind: output, shape index: {}]
  %s3 = sld [smem:[#allocation0]]
  $region30: #{tpu_custom_call.1} parent=0
    _
  %s5 = ssub.s32 1, %s3
  %s6 = scalar_select 0, %s5, %s3
  $region1: #{tpu_custom_call.1} parent=0
    #allocation5 [shape = 'u8[8192]{0}', space=vmem, size = 0x2000, scoped, tag = 'input window, operand 0, single buffered']
    #allocation6 [shape = 's32[1]{0}', space=sflag, size = 0x4, scoped, tag = 'scoped memory for tpu_custom_call.1']
    #allocation7 [shape = 's32[1]{0}', space=sflag, size = 0x4, scoped, tag = 'scoped memory for tpu_custom_call.1']
    #allocation8 [shape = 'u8[1024]{0}', space=vmem, size = 0x400, scoped, tag = 'output window, operand 0, single buffered']
    %7 = vsyncpa [#allocation6], 0
    %8 = vsyncpa [#allocation7], 0
    // Predicated region
    $region2: #{tpu_custom_call.1} parent=1 // pred_check
      _
    $region3: #{tpu_custom_call.1} parent=1 // pred_check_branch
      %10 = sbr.rel (0) target = $region5
    $region4: #{tpu_custom_call.1} parent=1 // pred_region
      %s12 = ssub.s32 256, 256
      %13 = vsyncadd [#allocation6], %s12
      %s14 = sshll.u32 [#allocation5], 4
      %s15 = int_to_ptr.vmem [resolvable:$true] %s14
      %20 = dma.hbm_to_vmem [thread:$0]  %s0, 256, %s15, [#allocation6], 128, 128, 8
    $region5: #{tpu_custom_call.1} parent=1 // pred_fallthru
      _
    // Predicated region
    $region6: #{tpu_custom_call.1} parent=1 // pred_check
      _
    $region7: #{tpu_custom_call.1} parent=1 // pred_check_branch
      %22 = sbr.rel (0) target = $region9
    $region8: #{tpu_custom_call.1} parent=1 // pred_region
      _
    $region9: #{tpu_custom_call.1} parent=1 // pred_fallthru
      _
    // Predicated region
    $region10: #{tpu_custom_call.1} parent=1 // pred_check
      _
    $region11: #{tpu_custom_call.1} parent=1 // pred_check_branch
      %24 = sbr.rel (0) target = $region13
    $region12: #{tpu_custom_call.1} parent=1 // pred_region
      %25 = dma.done [#allocation6], 256
    $region13: #{tpu_custom_call.1} parent=1 // pred_fallthru
      _
    %p26 = scmp.eq.s32.totalorder 0, 0
    // Predicated region
    $region14: #{tpu_custom_call.1} parent=1 // pred_check
      %p27 = pneg %p26
    $region15: #{tpu_custom_call.1} parent=1 // pred_check_branch
      %29 = sbr.rel (%p27) target = $region17
    $region16: #{tpu_custom_call.1} parent=1 // pred_region
      %vm30 = vcmask 1024
      %31 = vst.msk [vmem:[#allocation2] sm:$0x3] %vm30, -inf
      %32 = vst.msk [vmem:[#allocation3] sm:$0x3] %vm30, 0.0
      %33 = vst [vmem:[#allocation4] sm:$0x3] 0.0
    $region17: #{tpu_custom_call.1} parent=1 // pred_fallthru
      _
    %v34 = vld [vmem:[%s1] sm:$0x1]
    %v35 = vld [vmem:[#allocation5] sm:$0xff]
    %v36 = vld [vmem:[#allocation5 + $0x8] sm:$0xff]
    %v38 = vlaneseq
    %v39 = vshrl.u32 %v38, 7
    %v40 = vsub.s32 0, %v39
    %v41 = vrot.slane %v34, %v40
    %v43 = vmul.f32 %v35, %v41
    %v44 = vmul.f32 %v36, %v41
    %45 = vadd.xlane.f32.xlu0 %v43
    %v46 = vpop.xlane.xlu0 %45
    %47 = vadd.xlane.f32.xlu0 %v44
    %v48 = vpop.xlane.xlu0 %47
    %v49 = vld [vmem:[#allocation2] sm:$0x3]
    %v52 = vlaneseq
    %v53 = vand.u32 %v52, 127
    %v54 = vlaneseq
    %v55 = vshrl.u32 %v54, 7
    %v56 = vsub.s32 %v53, %v55
    %v57 = vrot.slane %v46, %v56
    %v58 = vlaneseq
    %v59 = vshrl.u32 %v58, 7
    %v60 = vsub.s32 %v53, %v59
    %v61 = vrot.slane %v48, %v60
    %vm62 = vcmask 1041409
    %v63 = vsel %vm62, %v61, %v57
    %vm65 = vcmask 58368
    %v66 = vsel %vm65, %v63, -inf
    %67 = vmax.xlane.f32.xlu0 %v66
    %v68 = vpop.xlane.xlu0 %67
    %v69 = vmax.f32 %v49, %v68
    %v70 = vsub.f32 %v49, %v69
    %v71 = vmul.f32 %v70, 1.442695
    %v72 = vpow.pop %v71
    %74 = vset.pattern.permute.xlu0 0
    %75 = vperm.xlu0 %74, %v69
    %v76 = vpop.permute.xlu0 %75
    %v77 = vlaneseq
    %v78 = vshrl.u32 %v77, 7
    %v79 = vsub.s32 0, %v78
    %v80 = vrot.slane %v76, %v79
    %v81 = vlaneseq
    %v82 = vshrl.u32 %v81, 7
    %v83 = vsub.s32 1, %v82
    %v84 = vrot.slane %v76, %v83
    %v87 = vsub.f32 %v46, %v80
    %v88 = vsub.f32 %v48, %v84
    %v89 = vmul.f32 %v87, 1.442695
    %v90 = vpow.pop %v89
    %v91 = vmul.f32 %v88, 1.442695
    %v92 = vpow.pop %v91
    %v93 = vld [vmem:[#allocation3] sm:$0x3]
    %v94 = vmul.f32 %v72, %v93
    %97 = vset.pattern.permute.xlu0 0
    %98 = vperm.xlu0 %97, %v90
    %v99 = vpop.permute.xlu0 %98
    %100 = vset.pattern.permute.xlu0 0
    %101 = vperm.xlu0 %100, %v92
    %v102 = vpop.permute.xlu0 %101
    %v103 = vlaneseq
    %v104 = vshrl.u32 %v103, 7
    %v105 = vsub.s32 %v53, %v104
    %v106 = vrot.slane %v99, %v105
    %v107 = vlaneseq
    %v108 = vshrl.u32 %v107, 7
    %v109 = vsub.s32 %v53, %v108
    %v110 = vrot.slane %v102, %v109
    %v111 = vsel %vm62, %v110, %v106
    %v113 = vsel %vm65, %v111, 0.0
    %114 = vadd.xlane.f32.xlu0 %v113
    %v115 = vpop.xlane.xlu0 %114
    %v116 = vadd.f32 %v94, %v115
    %vm117 = vcmask 1024
    %118 = vst.msk [vmem:[#allocation3] sm:$0x3] %vm117, %v116
    %v119 = vld [vmem:[#allocation4] sm:$0x3]
    %121 = vset.pattern.permute.xlu0 0
    %122 = vperm.xlu0 %121, %v72
    %v123 = vpop.permute.xlu0 %122
    %v125 = vmul.f32 %v123, %v119
    %v126 = vld [vmem:[#allocation5] sm:$0xff]
    %v127 = vld [vmem:[#allocation5 + $0x8] sm:$0xff]
    %v130 = vmul.f32 %v99, %v126
    %v131 = vmul.f32 %v102, %v127
    %v132 = vrot.slane %v130, 4
    %v133 = vadd.f32 %v130, %v132
    %v134 = vrot.slane %v133, 2
    %v135 = vadd.f32 %v133, %v134
    %v136 = vrot.slane %v135, 1
    %v137 = vadd.f32 %v135, %v136
    %v138 = vrot.slane %v131, 4
    %v139 = vadd.f32 %v131, %v138
    %v140 = vrot.slane %v139, 2
    %v141 = vadd.f32 %v139, %v140
    %v142 = vrot.slane %v141, 1
    %v143 = vadd.f32 %v141, %v142
    %v146 = vsel %vm62, %v143, %v137
    %v148 = vadd.f32 %v125, %v146
    %149 = vst [vmem:[#allocation4] sm:$0x3] %v148
    %150 = vst.msk [vmem:[#allocation2] sm:$0x3] %vm117, %v69
    // Predicated region
    $region18: #{tpu_custom_call.1} parent=1 // pred_check
      %p151 = pneg %p26
    $region19: #{tpu_custom_call.1} parent=1 // pred_check_branch
      %153 = sbr.rel (%p151) target = $region21
    $region20: #{tpu_custom_call.1} parent=1 // pred_region
      %v154 = vld [vmem:[#allocation3] sm:$0x3]
      %v155 = vrcp.pop %v154
      %v156 = vld [vmem:[#allocation4] sm:$0x3]
      %158 = vset.pattern.permute.xlu0 0
      %159 = vperm.xlu0 %158, %v155
      %v160 = vpop.permute.xlu0 %159
      %v162 = vmul.f32 %v156, %v160
      %163 = vst [vmem:[#allocation8] sm:$0x3] %v162
    $region21: #{tpu_custom_call.1} parent=1 // pred_fallthru
      _
    // Predicated region
    $region22: #{tpu_custom_call.1} parent=1 // pred_check
      _
    $region23: #{tpu_custom_call.1} parent=1 // pred_check_branch
      %165 = sbr.rel (0) target = $region25
    $region24: #{tpu_custom_call.1} parent=1 // pred_region
      %s167 = ssub.s32 32, 32
      %168 = vsyncadd [#allocation7], %s167
      %s170 = sshll.u32 [#allocation8], 4
      %s171 = int_to_ptr.vmem [resolvable:$true] %s170
      %173 = dma.vmem_to_hbm [thread:$0]  %s171, 32, %s2, [#allocation7]
    $region25: #{tpu_custom_call.1} parent=1 // pred_fallthru
      _
    // Predicated region
    $region26: #{tpu_custom_call.1} parent=1 // pred_check
      _
    $region27: #{tpu_custom_call.1} parent=1 // pred_check_branch
      %175 = sbr.rel (0) target = $region29
    $region28: #{tpu_custom_call.1} parent=1 // pred_region
      %176 = dma.done [#allocation7], 32
    $region29: #{tpu_custom_call.1} parent=1 // pred_fallthru
      _
    %177 = vsyncpa [#allocation6], 1
    %178 = vsyncpa [#allocation7], 1

</llo_original>
